<compile_context>
chip_gen: v7x
topology: tpu7x:2x2x1
jax: 0.10.0
libtpu: 0.0.40
codegen_flags: <defaults>
</compile_context>

<pallas_src>
import jax
import jax.numpy as jnp
from jax.experimental import pallas as pl
from jax.experimental.pallas import tpu as pltpu

BN_EPS = 1e-5


# ---------------------------------------------------------------------------
# Kernel
# ---------------------------------------------------------------------------
def _bn_relu(h, gamma, beta):
    """Train-mode BatchNorm1d + ReLU on an f32 tile, fused to one FMA."""
    # Single-pass batch statistics (two simultaneous axis=0 reductions).
    m = jnp.mean(h, axis=0, keepdims=True)                       # (1, H)
    msq = jnp.mean(h * h, axis=0, keepdims=True)                 # (1, H)
    var = jnp.maximum(msq - m * m, 0.0)                          # biased var, f32
    # Fold (x - m) * rsqrt(var+eps) * gamma + beta into scale/shift row math.
    scale = gamma * jax.lax.rsqrt(var + BN_EPS)                  # (1, H)
    shift = beta - m * scale                                     # (1, H)
    return jnp.maximum(h * scale + shift, 0.0)                   # one FMA + max


def make_mlp_kernel(n_hidden):
    """Kernel refs: x, (w, gamma, beta) * n_hidden, w_out, b_out, out."""

    def kernel(*refs):
        out_ref = refs[-1]
        h = refs[0][...]                                         # bf16 [B, Fp]
        idx = 1
        for _ in range(n_hidden):
            w_ref, g_ref, be_ref = refs[idx], refs[idx + 1], refs[idx + 2]
            idx += 3
            # Linear without bias (bias is a no-op before train-mode BN).
            z = jnp.dot(h, w_ref[...], preferred_element_type=jnp.float32)
            h = _bn_relu(z, g_ref[...], be_ref[...]).astype(jnp.bfloat16)
        w_ref, b_ref = refs[idx], refs[idx + 1]
        out = jnp.dot(h, w_ref[...], preferred_element_type=jnp.float32) + b_ref[...]
        out_ref[...] = out.astype(out_ref.dtype)

    return kernel


# ---------------------------------------------------------------------------
# Wrapper: lane-dense padding + bf16 casts + pallas_call
# ---------------------------------------------------------------------------
def _round_up(n, m):
    return ((n + m - 1) // m) * m


def _pad_to(a, shape, value=0.0):
    pads = [(0, t - s) for s, t in zip(a.shape, shape)]
    return jnp.pad(a, pads, constant_values=value)


def simple_mlp_forward(x, params):
    """params (f32, PyTorch-equivalent layout, weights stored [in, out]):
       (w1, b1, g1, be1, ..., wL, bL, gL, beL, w_out, b_out)."""
    n_hidden = (len(params) - 2) // 4
    B, F = x.shape
    C = params[-2].shape[1]

    Fp = _round_up(F, 128)
    Cp = _round_up(C, 128)

    kernel_inputs = [_pad_to(x, (B, Fp)).astype(jnp.bfloat16)]
    in_dim = Fp
    for layer in range(n_hidden):
        w, _b, g, be = params[4 * layer: 4 * layer + 4]          # bias dropped
        Hp = _round_up(w.shape[1], 128)
        kernel_inputs.append(_pad_to(w, (in_dim, Hp)).astype(jnp.bfloat16))
        kernel_inputs.append(_pad_to(g, (1, Hp), value=1.0))     # f32 gamma
        kernel_inputs.append(_pad_to(be, (1, Hp), value=0.0))    # f32 beta
        in_dim = Hp
    w_out, b_out = params[-2], params[-1]
    kernel_inputs.append(_pad_to(w_out, (in_dim, Cp)).astype(jnp.bfloat16))
    kernel_inputs.append(_pad_to(b_out, (1, Cp), value=0.0))     # f32 bias

    vmem = pl.BlockSpec(memory_space=pltpu.MemorySpace.VMEM)
    out_padded = pl.pallas_call(
        make_mlp_kernel(n_hidden),
        out_shape=jax.ShapeDtypeStruct((B, Cp), jnp.float32),
        in_specs=[vmem] * len(kernel_inputs),
        out_specs=vmem,
    )(*kernel_inputs)
    return out_padded[:, :C]


# ---------------------------------------------------------------------------
# Param init (PyTorch-style Linear init; BN gamma=1, beta=0) and references
# ---------------------------------------------------------------------------
def init_params(key, num_input_features, hidden_nodes_list, num_classes):
    dims = [num_input_features] + list(hidden_nodes_list) + [num_classes]
    params = []
    for i in range(len(dims) - 1):
        fan_in, fan_out = dims[i], dims[i + 1]
        key, kw, kb = jax.random.split(key, 3)
        bound = 1.0 / jnp.sqrt(fan_in)
        w = jax.random.uniform(kw, (fan_in, fan_out), jnp.float32, -bound, bound)
        b = jax.random.uniform(kb, (1, fan_out), jnp.float32, -bound, bound)
        params.extend([w, b])
        if i < len(hidden_nodes_list):
            params.extend([jnp.ones((1, fan_out), jnp.float32),
                           jnp.zeros((1, fan_out), jnp.float32)])
    return tuple(params)


def reference_forward_f32(x, params):
    """Full-f32 PyTorch-semantics reference (biases included, two-pass var)."""
    n_hidden = (len(params) - 2) // 4
    h = x
    for layer in range(n_hidden):
        w, b, g, be = params[4 * layer: 4 * layer + 4]
        h = h @ w + b
        m = h.mean(axis=0, keepdims=True)
        v = ((h - m) ** 2).mean(axis=0, keepdims=True)
        h = jnp.maximum((h - m) / jnp.sqrt(v + BN_EPS) * g + be, 0.0)
    return h @ params[-2] + params[-1]


def reference_forward_kernel_math(x, params):
    """Pure-JAX mirror of the kernel math (bf16 matmuls, fused BN, no pre-BN bias)."""
    n_hidden = (len(params) - 2) // 4
    h = x
    for layer in range(n_hidden):
        w, _b, g, be = params[4 * layer: 4 * layer + 4]
        z = jnp.dot(h.astype(jnp.bfloat16), w.astype(jnp.bfloat16),
                    preferred_element_type=jnp.float32)
        m = z.mean(axis=0, keepdims=True)
        var = jnp.maximum((z * z).mean(axis=0, keepdims=True) - m * m, 0.0)
        scale = g * jax.lax.rsqrt(var + BN_EPS)
        h = jnp.maximum(z * scale + (be - m * scale), 0.0)
    return jnp.dot(h.astype(jnp.bfloat16), params[-2].astype(jnp.bfloat16),
                   preferred_element_type=jnp.float32) + params[-1]


# ---------------------------------------------------------------------------
if __name__ == "__main__":
    # Module config: num_input_features = len(max_input_features)
    max_input_features = [10] * 8          # -> 8 input features
    hidden_nodes_list = [32, 32]
    num_classes = 4
    batch = 8

    key = jax.random.PRNGKey(0)
    key, kx = jax.random.split(key)
    x = jax.random.normal(kx, (batch, len(max_input_features)), jnp.float32)
    params = init_params(key, len(max_input_features), hidden_nodes_list, num_classes)

    out = jax.block_until_ready(simple_mlp_forward(x, params))
    assert out.shape == (batch, num_classes)

    # Tight check against a reference that uses the exact kernel math.
    ref_k = reference_forward_kernel_math(x, params)
    assert jnp.allclose(out, ref_k, atol=1e-3, rtol=1e-3), "kernel-math mismatch"

    # Loose check against the full-f32 PyTorch-semantics forward
    # (gap is bounded by the bf16 weight/activation rounding).
    ref32 = reference_forward_f32(x, params)
    assert jnp.allclose(out, ref32, atol=5e-2, rtol=5e-2), "f32 semantics drift"

    print("KERNEL_OK")
</pallas_src>

<mosaic_0001>
module attributes {stable_mosaic.version = 11 : i64} {
  func.func @kernel(%arg0: memref<8x128xbf16, #tpu.memory_space<vmem>>, %arg1: memref<128x128xbf16, #tpu.memory_space<vmem>>, %arg2: memref<1x128xf32, #tpu.memory_space<vmem>>, %arg3: memref<1x128xf32, #tpu.memory_space<vmem>>, %arg4: memref<128x128xbf16, #tpu.memory_space<vmem>>, %arg5: memref<1x128xf32, #tpu.memory_space<vmem>>, %arg6: memref<1x128xf32, #tpu.memory_space<vmem>>, %arg7: memref<128x128xbf16, #tpu.memory_space<vmem>>, %arg8: memref<1x128xf32, #tpu.memory_space<vmem>>, %arg9: memref<8x128xf32, #tpu.memory_space<vmem>>) attributes {dimension_semantics = [], scalar_prefetch = 0 : i64, scratch_operands = 0 : i64, tpu.core_type = #tpu.core_type<tc>} {
    %c0 = arith.constant 0 : index
    %c0_0 = arith.constant 0 : index
    %0 = vector.load %arg0[%c0, %c0_0] : memref<8x128xbf16, #tpu.memory_space<vmem>>, vector<8x128xbf16>
    %c0_1 = arith.constant 0 : index
    %c0_2 = arith.constant 0 : index
    %1 = vector.load %arg1[%c0_1, %c0_2] : memref<128x128xbf16, #tpu.memory_space<vmem>>, vector<128x128xbf16>
    %cst = arith.constant dense<0.000000e+00> : vector<8x128xf32>
    %2 = tpu.matmul %0, %1, %cst {dimension_numbers = #tpu.dot_dimension_numbers<[1], [0], [0], [1], [0, 0, 1, 1], [], []>} : vector<8x128xbf16>, vector<128x128xbf16>, vector<8x128xf32> -> vector<8x128xf32>
    %c0_3 = arith.constant 0 : index
    %c0_4 = arith.constant 0 : index
    %3 = vector.load %arg2[%c0_3, %c0_4] : memref<1x128xf32, #tpu.memory_space<vmem>>, vector<1x128xf32>
    %c0_5 = arith.constant 0 : index
    %c0_6 = arith.constant 0 : index
    %4 = vector.load %arg3[%c0_5, %c0_6] : memref<1x128xf32, #tpu.memory_space<vmem>>, vector<1x128xf32>
    %cst_7 = arith.constant dense<0.000000e+00> : vector<128xf32>
    %5 = vector.multi_reduction <add>, %2, %cst_7 [0] : vector<8x128xf32> to vector<128xf32>
    %6 = vector.shape_cast %5 : vector<128xf32> to vector<1x128xf32>
    %cst_8 = arith.constant 8.000000e+00 : f32
    %7 = vector.broadcast %cst_8 : f32 to vector<1x128xf32>
    %8 = arith.divf %6, %7 : vector<1x128xf32>
    %9 = arith.mulf %2, %2 : vector<8x128xf32>
    %cst_9 = arith.constant dense<0.000000e+00> : vector<128xf32>
    %10 = vector.multi_reduction <add>, %9, %cst_9 [0] : vector<8x128xf32> to vector<128xf32>
    %11 = vector.shape_cast %10 : vector<128xf32> to vector<1x128xf32>
    %cst_10 = arith.constant 8.000000e+00 : f32
    %12 = vector.broadcast %cst_10 : f32 to vector<1x128xf32>
    %13 = arith.divf %11, %12 : vector<1x128xf32>
    %14 = arith.mulf %8, %8 : vector<1x128xf32>
    %15 = arith.subf %13, %14 : vector<1x128xf32>
    %cst_11 = arith.constant 0.000000e+00 : f32
    %16 = vector.broadcast %cst_11 : f32 to vector<1x128xf32>
    %17 = arith.maximumf %15, %16 : vector<1x128xf32>
    %cst_12 = arith.constant 9.99999974E-6 : f32
    %18 = vector.broadcast %cst_12 : f32 to vector<1x128xf32>
    %19 = arith.addf %17, %18 : vector<1x128xf32>
    %20 = math.rsqrt %19 : vector<1x128xf32>
    %21 = arith.mulf %3, %20 : vector<1x128xf32>
    %22 = arith.mulf %8, %21 : vector<1x128xf32>
    %23 = arith.subf %4, %22 : vector<1x128xf32>
    %24 = vector.broadcast %21 : vector<1x128xf32> to vector<8x128xf32>
    %25 = arith.mulf %2, %24 : vector<8x128xf32>
    %26 = vector.broadcast %23 : vector<1x128xf32> to vector<8x128xf32>
    %27 = arith.addf %25, %26 : vector<8x128xf32>
    %cst_13 = arith.constant 0.000000e+00 : f32
    %28 = vector.broadcast %cst_13 : f32 to vector<8x128xf32>
    %29 = arith.maximumf %27, %28 : vector<8x128xf32>
    %30 = arith.truncf %29 : vector<8x128xf32> to vector<8x128xbf16>
    %c0_14 = arith.constant 0 : index
    %c0_15 = arith.constant 0 : index
    %31 = vector.load %arg4[%c0_14, %c0_15] : memref<128x128xbf16, #tpu.memory_space<vmem>>, vector<128x128xbf16>
    %cst_16 = arith.constant dense<0.000000e+00> : vector<8x128xf32>
    %32 = tpu.matmul %30, %31, %cst_16 {dimension_numbers = #tpu.dot_dimension_numbers<[1], [0], [0], [1], [0, 0, 1, 1], [], []>} : vector<8x128xbf16>, vector<128x128xbf16>, vector<8x128xf32> -> vector<8x128xf32>
    %c0_17 = arith.constant 0 : index
    %c0_18 = arith.constant 0 : index
    %33 = vector.load %arg5[%c0_17, %c0_18] : memref<1x128xf32, #tpu.memory_space<vmem>>, vector<1x128xf32>
    %c0_19 = arith.constant 0 : index
    %c0_20 = arith.constant 0 : index
    %34 = vector.load %arg6[%c0_19, %c0_20] : memref<1x128xf32, #tpu.memory_space<vmem>>, vector<1x128xf32>
    %cst_21 = arith.constant dense<0.000000e+00> : vector<128xf32>
    %35 = vector.multi_reduction <add>, %32, %cst_21 [0] : vector<8x128xf32> to vector<128xf32>
    %36 = vector.shape_cast %35 : vector<128xf32> to vector<1x128xf32>
    %cst_22 = arith.constant 8.000000e+00 : f32
    %37 = vector.broadcast %cst_22 : f32 to vector<1x128xf32>
    %38 = arith.divf %36, %37 : vector<1x128xf32>
    %39 = arith.mulf %32, %32 : vector<8x128xf32>
    %cst_23 = arith.constant dense<0.000000e+00> : vector<128xf32>
    %40 = vector.multi_reduction <add>, %39, %cst_23 [0] : vector<8x128xf32> to vector<128xf32>
    %41 = vector.shape_cast %40 : vector<128xf32> to vector<1x128xf32>
    %cst_24 = arith.constant 8.000000e+00 : f32
    %42 = vector.broadcast %cst_24 : f32 to vector<1x128xf32>
    %43 = arith.divf %41, %42 : vector<1x128xf32>
    %44 = arith.mulf %38, %38 : vector<1x128xf32>
    %45 = arith.subf %43, %44 : vector<1x128xf32>
    %cst_25 = arith.constant 0.000000e+00 : f32
    %46 = vector.broadcast %cst_25 : f32 to vector<1x128xf32>
    %47 = arith.maximumf %45, %46 : vector<1x128xf32>
    %cst_26 = arith.constant 9.99999974E-6 : f32
    %48 = vector.broadcast %cst_26 : f32 to vector<1x128xf32>
    %49 = arith.addf %47, %48 : vector<1x128xf32>
    %50 = math.rsqrt %49 : vector<1x128xf32>
    %51 = arith.mulf %33, %50 : vector<1x128xf32>
    %52 = arith.mulf %38, %51 : vector<1x128xf32>
    %53 = arith.subf %34, %52 : vector<1x128xf32>
    %54 = vector.broadcast %51 : vector<1x128xf32> to vector<8x128xf32>
    %55 = arith.mulf %32, %54 : vector<8x128xf32>
    %56 = vector.broadcast %53 : vector<1x128xf32> to vector<8x128xf32>
    %57 = arith.addf %55, %56 : vector<8x128xf32>
    %cst_27 = arith.constant 0.000000e+00 : f32
    %58 = vector.broadcast %cst_27 : f32 to vector<8x128xf32>
    %59 = arith.maximumf %57, %58 : vector<8x128xf32>
    %60 = arith.truncf %59 : vector<8x128xf32> to vector<8x128xbf16>
    %c0_28 = arith.constant 0 : index
    %c0_29 = arith.constant 0 : index
    %61 = vector.load %arg7[%c0_28, %c0_29] : memref<128x128xbf16, #tpu.memory_space<vmem>>, vector<128x128xbf16>
    %cst_30 = arith.constant dense<0.000000e+00> : vector<8x128xf32>
    %62 = tpu.matmul %60, %61, %cst_30 {dimension_numbers = #tpu.dot_dimension_numbers<[1], [0], [0], [1], [0, 0, 1, 1], [], []>} : vector<8x128xbf16>, vector<128x128xbf16>, vector<8x128xf32> -> vector<8x128xf32>
    %c0_31 = arith.constant 0 : index
    %c0_32 = arith.constant 0 : index
    %63 = vector.load %arg8[%c0_31, %c0_32] : memref<1x128xf32, #tpu.memory_space<vmem>>, vector<1x128xf32>
    %64 = vector.broadcast %63 : vector<1x128xf32> to vector<8x128xf32>
    %65 = arith.addf %62, %64 : vector<8x128xf32>
    %c0_33 = arith.constant 0 : index
    %c0_34 = arith.constant 0 : index
    %66 = vector.load %arg9[%c0_33, %c0_34] : memref<8x128xf32, #tpu.memory_space<vmem>>, vector<8x128xf32>
    tpu.vector_store %arg9[%c0_33, %c0_34], %65 {strides = array<i32>} : memref<8x128xf32, #tpu.memory_space<vmem>>, vector<8x128xf32>,
    return
  }
}

</mosaic_0001>

<llo_original>
// kernel: tpu_custom_call.1
$region0: #{tpu_custom_call.1}
  #allocation0 [shape = 'u32[]', space=smem, size = 0x4, offset = 0x4, fixed_abs, tag = 'smem constant byte address 0x4 - core index']
  #allocation1 [shape = 'u32[144,128]{1,0:T(1,128)}', space=vmem, size = 0x12000, scoped, tag = 'internal scratch']
  %s0 = inlined_call_operand.hbm [shape: bf16[8,128], index: 0, kind: input, shape index: {}]
  %s1 = inlined_call_operand.hbm [shape: bf16[128,128], index: 1, kind: input, shape index: {}]
  %s2 = inlined_call_operand.vmem [shape: f32[1,128], index: 2, kind: input, shape index: {}]
  %s3 = inlined_call_operand.vmem [shape: f32[1,128], index: 3, kind: input, shape index: {}]
  %s4 = inlined_call_operand.hbm [shape: bf16[128,128], index: 4, kind: input, shape index: {}]
  %s5 = inlined_call_operand.vmem [shape: f32[1,128], index: 5, kind: input, shape index: {}]
  %s6 = inlined_call_operand.vmem [shape: f32[1,128], index: 6, kind: input, shape index: {}]
  %s7 = inlined_call_operand.hbm [shape: bf16[128,128], index: 7, kind: input, shape index: {}]
  %s8 = inlined_call_operand.vmem [shape: f32[1,128], index: 8, kind: input, shape index: {}]
  %s9 = inlined_call_operand.hbm [shape: f32[8,128], index: 9, kind: output, shape index: {}]
  %s10 = sld [smem:[#allocation0]]
  $region62: #{tpu_custom_call.1} parent=0
    _
  %s12 = ssub.s32 1, %s10
  %s13 = scalar_select 0, %s12, %s10
  $region1: #{tpu_custom_call.1} parent=0
    #allocation2 [shape = 'u8[2048]{0}', space=vmem, size = 0x800, scoped, tag = 'input window, operand 0, single buffered']
    #allocation3 [shape = 's32[1]{0}', space=sflag, size = 0x4, scoped, tag = 'scoped memory for tpu_custom_call.1']
    #allocation4 [shape = 's32[1]{0}', space=sflag, size = 0x4, scoped, tag = 'scoped memory for tpu_custom_call.1']
    #allocation5 [shape = 'u8[32768]{0}', space=vmem, size = 0x8000, scoped, tag = 'input window, operand 1, single buffered']
    #allocation6 [shape = 's32[1]{0}', space=sflag, size = 0x4, scoped, tag = 'scoped memory for tpu_custom_call.1']
    #allocation7 [shape = 'u8[32768]{0}', space=vmem, size = 0x8000, scoped, tag = 'input window, operand 4, single buffered']
    #allocation8 [shape = 'u8[32768]{0}', space=vmem, size = 0x8000, scoped, tag = 'input window, operand 7, single buffered']
    #allocation9 [shape = 's32[1]{0}', space=sflag, size = 0x4, scoped, tag = 'scoped memory for tpu_custom_call.1']
    #allocation10 [shape = 'u8[4096]{0}', space=vmem, size = 0x1000, scoped, tag = 'output window, operand 0, single buffered']
    %14 = vsyncpa [#allocation3], 0
    %15 = vsyncpa [#allocation6], 0
    %16 = vsyncpa [#allocation9], 0
    %17 = vsyncpa [#allocation4], 0
    // Predicated region
    $region2: #{tpu_custom_call.1} parent=1 // pred_check
      _
    $region3: #{tpu_custom_call.1} parent=1 // pred_check_branch
      %19 = sbr.rel (0) target = $region5
    $region4: #{tpu_custom_call.1} parent=1 // pred_region
      %s21 = ssub.s32 64, 64
      %22 = vsyncadd [#allocation3], %s21
      %s24 = sshll.u32 [#allocation2], 4
      %s25 = int_to_ptr.vmem [resolvable:$true] %s24
      %27 = dma.hbm_to_vmem [thread:$0]  %s0, 64, %s25, [#allocation3]
    $region5: #{tpu_custom_call.1} parent=1 // pred_fallthru
      _
    // Predicated region
    $region6: #{tpu_custom_call.1} parent=1 // pred_check
      _
    $region7: #{tpu_custom_call.1} parent=1 // pred_check_branch
      %29 = sbr.rel (0) target = $region9
    $region8: #{tpu_custom_call.1} parent=1 // pred_region
      %s31 = ssub.s32 1024, 1024
      %32 = vsyncadd [#allocation6], %s31
      %s33 = sshll.u32 [#allocation5], 4
      %s34 = int_to_ptr.vmem [resolvable:$true] %s33
      %39 = dma.hbm_to_vmem [thread:$0]  %s1, 1024, %s34, [#allocation6], 64, 64, 4
    $region9: #{tpu_custom_call.1} parent=1 // pred_fallthru
      _
    // Predicated region
    $region10: #{tpu_custom_call.1} parent=1 // pred_check
      _
    $region11: #{tpu_custom_call.1} parent=1 // pred_check_branch
      %41 = sbr.rel (0) target = $region13
    $region12: #{tpu_custom_call.1} parent=1 // pred_region
      _
    $region13: #{tpu_custom_call.1} parent=1 // pred_fallthru
      _
    // Predicated region
    $region14: #{tpu_custom_call.1} parent=1 // pred_check
      _
    $region15: #{tpu_custom_call.1} parent=1 // pred_check_branch
      %43 = sbr.rel (0) target = $region17
    $region16: #{tpu_custom_call.1} parent=1 // pred_region
      _
    $region17: #{tpu_custom_call.1} parent=1 // pred_fallthru
      _
    // Predicated region
    $region18: #{tpu_custom_call.1} parent=1 // pred_check
      _
    $region19: #{tpu_custom_call.1} parent=1 // pred_check_branch
      %45 = sbr.rel (0) target = $region21
    $region20: #{tpu_custom_call.1} parent=1 // pred_region
      %s47 = ssub.s32 1024, 1024
      %48 = vsyncadd [#allocation6], %s47
      %s49 = sshll.u32 [#allocation7], 4
      %s50 = int_to_ptr.vmem [resolvable:$true] %s49
      %55 = dma.hbm_to_vmem [thread:$0]  %s4, 1024, %s50, [#allocation6], 64, 64, 4
    $region21: #{tpu_custom_call.1} parent=1 // pred_fallthru
      _
    // Predicated region
    $region22: #{tpu_custom_call.1} parent=1 // pred_check
      _
    $region23: #{tpu_custom_call.1} parent=1 // pred_check_branch
      %57 = sbr.rel (0) target = $region25
    $region24: #{tpu_custom_call.1} parent=1 // pred_region
      _
    $region25: #{tpu_custom_call.1} parent=1 // pred_fallthru
      _
    // Predicated region
    $region26: #{tpu_custom_call.1} parent=1 // pred_check
      _
    $region27: #{tpu_custom_call.1} parent=1 // pred_check_branch
      %59 = sbr.rel (0) target = $region29
    $region28: #{tpu_custom_call.1} parent=1 // pred_region
      _
    $region29: #{tpu_custom_call.1} parent=1 // pred_fallthru
      _
    // Predicated region
    $region30: #{tpu_custom_call.1} parent=1 // pred_check
      _
    $region31: #{tpu_custom_call.1} parent=1 // pred_check_branch
      %61 = sbr.rel (0) target = $region33
    $region32: #{tpu_custom_call.1} parent=1 // pred_region
      %s63 = ssub.s32 1024, 1024
      %64 = vsyncadd [#allocation9], %s63
      %s65 = sshll.u32 [#allocation8], 4
      %s66 = int_to_ptr.vmem [resolvable:$true] %s65
      %71 = dma.hbm_to_vmem [thread:$0]  %s7, 1024, %s66, [#allocation9], 64, 64, 4
    $region33: #{tpu_custom_call.1} parent=1 // pred_fallthru
      _
    // Predicated region
    $region34: #{tpu_custom_call.1} parent=1 // pred_check
      _
    $region35: #{tpu_custom_call.1} parent=1 // pred_check_branch
      %73 = sbr.rel (0) target = $region37
    $region36: #{tpu_custom_call.1} parent=1 // pred_region
      _
    $region37: #{tpu_custom_call.1} parent=1 // pred_fallthru
      _
    // Predicated region
    $region38: #{tpu_custom_call.1} parent=1 // pred_check
      _
    $region39: #{tpu_custom_call.1} parent=1 // pred_check_branch
      %75 = sbr.rel (0) target = $region41
    $region40: #{tpu_custom_call.1} parent=1 // pred_region
      %76 = dma.done [#allocation3], 64
    $region41: #{tpu_custom_call.1} parent=1 // pred_fallthru
      _
    // Predicated region
    $region42: #{tpu_custom_call.1} parent=1 // pred_check
      _
    $region43: #{tpu_custom_call.1} parent=1 // pred_check_branch
      %78 = sbr.rel (0) target = $region45
    $region44: #{tpu_custom_call.1} parent=1 // pred_region
      %79 = dma.done [#allocation6], 1024
    $region45: #{tpu_custom_call.1} parent=1 // pred_fallthru
      _
    // Predicated region
    $region46: #{tpu_custom_call.1} parent=1 // pred_check
      _
    $region47: #{tpu_custom_call.1} parent=1 // pred_check_branch
      %81 = sbr.rel (0) target = $region49
    $region48: #{tpu_custom_call.1} parent=1 // pred_region
      %82 = dma.done [#allocation6], 1024
    $region49: #{tpu_custom_call.1} parent=1 // pred_fallthru
      _
    // Predicated region
    $region50: #{tpu_custom_call.1} parent=1 // pred_check
      _
    $region51: #{tpu_custom_call.1} parent=1 // pred_check_branch
      %84 = sbr.rel (0) target = $region53
    $region52: #{tpu_custom_call.1} parent=1 // pred_region
      %85 = dma.done [#allocation9], 1024
    $region53: #{tpu_custom_call.1} parent=1 // pred_fallthru
      _
    %v87 = vld [vmem:[#allocation2] sm:$0xf]
    %v88 = vld [vmem:[#allocation5] sm:$0xf]
    %v89 = vld [vmem:[#allocation5 + $0x4] sm:$0xf]
    %v90 = vld [vmem:[#allocation5 + $0x8] sm:$0xf]
    %v91 = vld [vmem:[#allocation5 + $0xc] sm:$0xf]
    %v92 = vld [vmem:[#allocation5 + $0x10] sm:$0xf]
    %v93 = vld [vmem:[#allocation5 + $0x14] sm:$0xf]
    %v94 = vld [vmem:[#allocation5 + $0x18] sm:$0xf]
    %v95 = vld [vmem:[#allocation5 + $0x1c] sm:$0xf]
    %v96 = vld [vmem:[#allocation5 + $0x20] sm:$0xf]
    %v97 = vld [vmem:[#allocation5 + $0x24] sm:$0xf]
    %v98 = vld [vmem:[#allocation5 + $0x28] sm:$0xf]
    %v99 = vld [vmem:[#allocation5 + $0x2c] sm:$0xf]
    %v100 = vld [vmem:[#allocation5 + $0x30] sm:$0xf]
    %v101 = vld [vmem:[#allocation5 + $0x34] sm:$0xf]
    %v102 = vld [vmem:[#allocation5 + $0x38] sm:$0xf]
    %v103 = vld [vmem:[#allocation5 + $0x3c] sm:$0xf]
    %v120 = vunpack.c.l.b16 %v88
    %v121 = vunpack.c.l.b16 %v89
    %v122 = vunpack.c.l.b16 %v90
    %v123 = vunpack.c.l.b16 %v91
    %v124 = vunpack.c.l.b16 %v92
    %v125 = vunpack.c.l.b16 %v93
    %v126 = vunpack.c.l.b16 %v94
    %v127 = vunpack.c.l.b16 %v95
    %v128 = vunpack.c.l.b16 %v96
    %v129 = vunpack.c.l.b16 %v97
    %v130 = vunpack.c.l.b16 %v98
    %v131 = vunpack.c.l.b16 %v99
    %v132 = vunpack.c.l.b16 %v100
    %v133 = vunpack.c.l.b16 %v101
    %v134 = vunpack.c.l.b16 %v102
    %v135 = vunpack.c.l.b16 %v103
    %v136 = vpack.c.b16 %v121, %v120
    %v137 = vpack.c.b16 %v123, %v122
    %v138 = vpack.c.b16 %v125, %v124
    %v139 = vpack.c.b16 %v127, %v126
    %v140 = vpack.c.b16 %v129, %v128
    %v141 = vpack.c.b16 %v131, %v130
    %v142 = vpack.c.b16 %v133, %v132
    %v143 = vpack.c.b16 %v135, %v134
    %152 = vmatprep.subr.bf16.mxu0 0
    %153 = vmatpush1.bf16.msra.mxu0 %v136
    %154 = vmatprep.subr.bf16.mxu0 0
    %155 = vmatpush1.bf16.msra.mxu0 %v137
    %156 = vmatprep.subr.bf16.mxu0 0
    %157 = vmatpush1.bf16.msra.mxu0 %v138
    %158 = vmatprep.subr.bf16.mxu0 0
    %159 = vmatpush1.bf16.msra.mxu0 %v139
    %160 = vmatprep.subr.bf16.mxu0 0
    %161 = vmatpush1.bf16.msra.mxu0 %v140
    %162 = vmatprep.subr.bf16.mxu0 0
    %163 = vmatpush1.bf16.msra.mxu0 %v141
    %164 = vmatprep.subr.bf16.mxu0 0
    %165 = vmatpush1.bf16.msra.mxu0 %v142
    %166 = vmatprep.subr.bf16.mxu0 0
    %167 = vmatpush1.bf16.msra.mxu0 %v143
    %168 = vmatprep.subr.bf16.mxu0 0
    %169 = vmatpush1.bf16.msra.mxu0 0
    %170 = vmatprep.subr.bf16.mxu0 0
    %171 = vmatpush1.bf16.msra.mxu0 0
    %172 = vmatprep.subr.bf16.mxu0 0
    %173 = vmatpush1.bf16.msra.mxu0 0
    %174 = vmatprep.subr.bf16.mxu0 0
    %175 = vmatpush1.bf16.msra.mxu0 0
    %176 = vmatprep.subr.bf16.mxu0 0
    %177 = vmatpush1.bf16.msra.mxu0 0
    %178 = vmatprep.subr.bf16.mxu0 0
    %179 = vmatpush1.bf16.msra.mxu0 0
    %180 = vmatprep.subr.bf16.mxu0 0
    %181 = vmatpush1.bf16.msra.mxu0 0
    %182 = vmatprep.subr.bf16.mxu0 0
    %183 = vmatpush1.bf16.msra.mxu0 0
    %184 = vmatprep.mubr.bf16.mxu0 0
    %185 = vmatmul.mubr.bf16.gmra.mrb[0].mxu0 %v87
    %v186 = vpop.f32.mrb[0].mxu0
    %v187 = vadd.f32 0.0, %v186
    %v188 = vpop.f32.mrb[0].mxu0
    %v189 = vpop.f32.mrb[0].mxu0
    %v190 = vpop.f32.mrb[0].mxu0
    %191 = vdwg.mxu0
    %v192 = vld [vmem:[%s2] sm:$0x1]
    %v193 = vld [vmem:[%s3] sm:$0x1]
    %v194 = vrot.slane %v187, 4
    %v195 = vadd.f32 %v187, %v194
    %v196 = vrot.slane %v195, 2
    %v197 = vadd.f32 %v195, %v196
    %v198 = vrot.slane %v197, 1
    %v199 = vadd.f32 %v197, %v198
    %v200 = vrcp.pop 8.0
    %v201 = vmul.f32 %v199, %v200
    %v202 = vmul.f32 %v187, %v187
    %v203 = vrot.slane %v202, 4
    %v204 = vadd.f32 %v202, %v203
    %v205 = vrot.slane %v204, 2
    %v206 = vadd.f32 %v204, %v205
    %v207 = vrot.slane %v206, 1
    %v208 = vadd.f32 %v206, %v207
    %v209 = vmul.f32 %v208, %v200
    %v210 = vmul.f32 %v201, %v201
    %v211 = vsub.f32 %v209, %v210
    %v212 = vmax.f32 %v211, 0.0
    %v213 = vadd.f32 %v212, 1e-05
    %v214 = vrsqrt.pop %v213
    %v215 = vmul.f32 %v192, %v214
    %v216 = vmul.f32 %v201, %v215
    %v217 = vsub.f32 %v193, %v216
    %v219 = vlaneseq
    %v220 = vshrl.u32 %v219, 7
    %v221 = vsub.s32 0, %v220
    %v222 = vrot.slane %v215, %v221
    %v224 = vmul.f32 %v187, %v222
    %v226 = vlaneseq
    %v227 = vshrl.u32 %v226, 7
    %v228 = vsub.s32 0, %v227
    %v229 = vrot.slane %v217, %v228
    %v231 = vadd.f32 %v224, %v229
    %v232 = vmax.f32 %v231, 0.0
    %v233 = vpack.c.bf16 %v232, %v232
    %v234 = vld [vmem:[#allocation7] sm:$0xf]
    %v235 = vld [vmem:[#allocation7 + $0x4] sm:$0xf]
    %v236 = vld [vmem:[#allocation7 + $0x8] sm:$0xf]
    %v237 = vld [vmem:[#allocation7 + $0xc] sm:$0xf]
    %v238 = vld [vmem:[#allocation7 + $0x10] sm:$0xf]
    %v239 = vld [vmem:[#allocation7 + $0x14] sm:$0xf]
    %v240 = vld [vmem:[#allocation7 + $0x18] sm:$0xf]
    %v241 = vld [vmem:[#allocation7 + $0x1c] sm:$0xf]
    %v242 = vld [vmem:[#allocation7 + $0x20] sm:$0xf]
    %v243 = vld [vmem:[#allocation7 + $0x24] sm:$0xf]
    %v244 = vld [vmem:[#allocation7 + $0x28] sm:$0xf]
    %v245 = vld [vmem:[#allocation7 + $0x2c] sm:$0xf]
    %v246 = vld [vmem:[#allocation7 + $0x30] sm:$0xf]
    %v247 = vld [vmem:[#allocation7 + $0x34] sm:$0xf]
    %v248 = vld [vmem:[#allocation7 + $0x38] sm:$0xf]
    %v249 = vld [vmem:[#allocation7 + $0x3c] sm:$0xf]
    %v266 = vunpack.c.l.b16 %v234
    %v267 = vunpack.c.l.b16 %v235
    %v268 = vunpack.c.l.b16 %v236
    %v269 = vunpack.c.l.b16 %v237
    %v270 = vunpack.c.l.b16 %v238
    %v271 = vunpack.c.l.b16 %v239
    %v272 = vunpack.c.l.b16 %v240
    %v273 = vunpack.c.l.b16 %v241
    %v274 = vunpack.c.l.b16 %v242
    %v275 = vunpack.c.l.b16 %v243
    %v276 = vunpack.c.l.b16 %v244
    %v277 = vunpack.c.l.b16 %v245
    %v278 = vunpack.c.l.b16 %v246
    %v279 = vunpack.c.l.b16 %v247
    %v280 = vunpack.c.l.b16 %v248
    %v281 = vunpack.c.l.b16 %v249
    %v282 = vpack.c.b16 %v267, %v266
    %v283 = vpack.c.b16 %v269, %v268
    %v284 = vpack.c.b16 %v271, %v270
    %v285 = vpack.c.b16 %v273, %v272
    %v286 = vpack.c.b16 %v275, %v274
    %v287 = vpack.c.b16 %v277, %v276
    %v288 = vpack.c.b16 %v279, %v278
    %v289 = vpack.c.b16 %v281, %v280
    %298 = vmatprep.subr.bf16.mxu0 0
    %299 = vmatpush1.bf16.msra.mxu0 %v282
    %300 = vmatprep.subr.bf16.mxu0 0
    %301 = vmatpush1.bf16.msra.mxu0 %v283
    %302 = vmatprep.subr.bf16.mxu0 0
    %303 = vmatpush1.bf16.msra.mxu0 %v284
    %304 = vmatprep.subr.bf16.mxu0 0
    %305 = vmatpush1.bf16.msra.mxu0 %v285
    %306 = vmatprep.subr.bf16.mxu0 0
    %307 = vmatpush1.bf16.msra.mxu0 %v286
    %308 = vmatprep.subr.bf16.mxu0 0
    %309 = vmatpush1.bf16.msra.mxu0 %v287
    %310 = vmatprep.subr.bf16.mxu0 0
    %311 = vmatpush1.bf16.msra.mxu0 %v288
    %312 = vmatprep.subr.bf16.mxu0 0
    %313 = vmatpush1.bf16.msra.mxu0 %v289
    %314 = vmatprep.subr.bf16.mxu0 0
    %315 = vmatpush1.bf16.msra.mxu0 0
    %316 = vmatprep.subr.bf16.mxu0 0
    %317 = vmatpush1.bf16.msra.mxu0 0
    %318 = vmatprep.subr.bf16.mxu0 0
    %319 = vmatpush1.bf16.msra.mxu0 0
    %320 = vmatprep.subr.bf16.mxu0 0
    %321 = vmatpush1.bf16.msra.mxu0 0
    %322 = vmatprep.subr.bf16.mxu0 0
    %323 = vmatpush1.bf16.msra.mxu0 0
    %324 = vmatprep.subr.bf16.mxu0 0
    %325 = vmatpush1.bf16.msra.mxu0 0
    %326 = vmatprep.subr.bf16.mxu0 0
    %327 = vmatpush1.bf16.msra.mxu0 0
    %328 = vmatprep.subr.bf16.mxu0 0
    %329 = vmatpush1.bf16.msra.mxu0 0
    %330 = vmatprep.mubr.bf16.mxu0 0
    %331 = vmatmul.mubr.bf16.gmra.mrb[0].mxu0 %v233
    %v332 = vpop.f32.mrb[0].mxu0
    %v333 = vadd.f32 0.0, %v332
    %v334 = vpop.f32.mrb[0].mxu0
    %v335 = vpop.f32.mrb[0].mxu0
    %v336 = vpop.f32.mrb[0].mxu0
    %337 = vdwg.mxu0
    %v338 = vld [vmem:[%s5] sm:$0x1]
    %v339 = vld [vmem:[%s6] sm:$0x1]
    %v340 = vrot.slane %v333, 4
    %v341 = vadd.f32 %v333, %v340
    %v342 = vrot.slane %v341, 2
    %v343 = vadd.f32 %v341, %v342
    %v344 = vrot.slane %v343, 1
    %v345 = vadd.f32 %v343, %v344
    %v346 = vmul.f32 %v345, %v200
    %v347 = vmul.f32 %v333, %v333
    %v348 = vrot.slane %v347, 4
    %v349 = vadd.f32 %v347, %v348
    %v350 = vrot.slane %v349, 2
    %v351 = vadd.f32 %v349, %v350
    %v352 = vrot.slane %v351, 1
    %v353 = vadd.f32 %v351, %v352
    %v354 = vmul.f32 %v353, %v200
    %v355 = vmul.f32 %v346, %v346
    %v356 = vsub.f32 %v354, %v355
    %v357 = vmax.f32 %v356, 0.0
    %v358 = vadd.f32 %v357, 1e-05
    %v359 = vrsqrt.pop %v358
    %v360 = vmul.f32 %v338, %v359
    %v361 = vmul.f32 %v346, %v360
    %v362 = vsub.f32 %v339, %v361
    %v364 = vlaneseq
    %v365 = vshrl.u32 %v364, 7
    %v366 = vsub.s32 0, %v365
    %v367 = vrot.slane %v360, %v366
    %v369 = vmul.f32 %v333, %v367
    %v371 = vlaneseq
    %v372 = vshrl.u32 %v371, 7
    %v373 = vsub.s32 0, %v372
    %v374 = vrot.slane %v362, %v373
    %v376 = vadd.f32 %v369, %v374
    %v377 = vmax.f32 %v376, 0.0
    %v378 = vpack.c.bf16 %v377, %v377
    %v379 = vld [vmem:[#allocation8] sm:$0xf]
    %v380 = vld [vmem:[#allocation8 + $0x4] sm:$0xf]
    %v381 = vld [vmem:[#allocation8 + $0x8] sm:$0xf]
    %v382 = vld [vmem:[#allocation8 + $0xc] sm:$0xf]
    %v383 = vld [vmem:[#allocation8 + $0x10] sm:$0xf]
    %v384 = vld [vmem:[#allocation8 + $0x14] sm:$0xf]
    %v385 = vld [vmem:[#allocation8 + $0x18] sm:$0xf]
    %v386 = vld [vmem:[#allocation8 + $0x1c] sm:$0xf]
    %v387 = vld [vmem:[#allocation8 + $0x20] sm:$0xf]
    %v388 = vld [vmem:[#allocation8 + $0x24] sm:$0xf]
    %v389 = vld [vmem:[#allocation8 + $0x28] sm:$0xf]
    %v390 = vld [vmem:[#allocation8 + $0x2c] sm:$0xf]
    %v391 = vld [vmem:[#allocation8 + $0x30] sm:$0xf]
    %v392 = vld [vmem:[#allocation8 + $0x34] sm:$0xf]
    %v393 = vld [vmem:[#allocation8 + $0x38] sm:$0xf]
    %v394 = vld [vmem:[#allocation8 + $0x3c] sm:$0xf]
    %v395 = vld [vmem:[%s8] sm:$0x1]
    %v397 = vlaneseq
    %v398 = vshrl.u32 %v397, 7
    %v399 = vsub.s32 0, %v398
    %v400 = vrot.slane %v395, %v399
    %v418 = vunpack.c.l.b16 %v379
    %v419 = vunpack.c.l.b16 %v380
    %v420 = vunpack.c.l.b16 %v381
    %v421 = vunpack.c.l.b16 %v382
    %v422 = vunpack.c.l.b16 %v383
    %v423 = vunpack.c.l.b16 %v384
    %v424 = vunpack.c.l.b16 %v385
    %v425 = vunpack.c.l.b16 %v386
    %v426 = vunpack.c.l.b16 %v387
    %v427 = vunpack.c.l.b16 %v388
    %v428 = vunpack.c.l.b16 %v389
    %v429 = vunpack.c.l.b16 %v390
    %v430 = vunpack.c.l.b16 %v391
    %v431 = vunpack.c.l.b16 %v392
    %v432 = vunpack.c.l.b16 %v393
    %v433 = vunpack.c.l.b16 %v394
    %v434 = vpack.c.b16 %v419, %v418
    %v435 = vpack.c.b16 %v421, %v420
    %v436 = vpack.c.b16 %v423, %v422
    %v437 = vpack.c.b16 %v425, %v424
    %v438 = vpack.c.b16 %v427, %v426
    %v439 = vpack.c.b16 %v429, %v428
    %v440 = vpack.c.b16 %v431, %v430
    %v441 = vpack.c.b16 %v433, %v432
    %450 = vmatprep.subr.bf16.mxu0 0
    %451 = vmatpush1.bf16.msra.mxu0 %v434
    %452 = vmatprep.subr.bf16.mxu0 0
    %453 = vmatpush1.bf16.msra.mxu0 %v435
    %454 = vmatprep.subr.bf16.mxu0 0
    %455 = vmatpush1.bf16.msra.mxu0 %v436
    %456 = vmatprep.subr.bf16.mxu0 0
    %457 = vmatpush1.bf16.msra.mxu0 %v437
    %458 = vmatprep.subr.bf16.mxu0 0
    %459 = vmatpush1.bf16.msra.mxu0 %v438
    %460 = vmatprep.subr.bf16.mxu0 0
    %461 = vmatpush1.bf16.msra.mxu0 %v439
    %462 = vmatprep.subr.bf16.mxu0 0
    %463 = vmatpush1.bf16.msra.mxu0 %v440
    %464 = vmatprep.subr.bf16.mxu0 0
    %465 = vmatpush1.bf16.msra.mxu0 %v441
    %466 = vmatprep.subr.bf16.mxu0 0
    %467 = vmatpush1.bf16.msra.mxu0 0
    %468 = vmatprep.subr.bf16.mxu0 0
    %469 = vmatpush1.bf16.msra.mxu0 0
    %470 = vmatprep.subr.bf16.mxu0 0
    %471 = vmatpush1.bf16.msra.mxu0 0
    %472 = vmatprep.subr.bf16.mxu0 0
    %473 = vmatpush1.bf16.msra.mxu0 0
    %474 = vmatprep.subr.bf16.mxu0 0
    %475 = vmatpush1.bf16.msra.mxu0 0
    %476 = vmatprep.subr.bf16.mxu0 0
    %477 = vmatpush1.bf16.msra.mxu0 0
    %478 = vmatprep.subr.bf16.mxu0 0
    %479 = vmatpush1.bf16.msra.mxu0 0
    %480 = vmatprep.subr.bf16.mxu0 0
    %481 = vmatpush1.bf16.msra.mxu0 0
    %482 = vmatprep.mubr.bf16.mxu0 0
    %483 = vmatmul.mubr.bf16.gmra.mrb[0].mxu0 %v378
    %v484 = vpop.f32.mrb[0].mxu0
    %v485 = vadd.f32 %v400, %v484
    %v486 = vpop.f32.mrb[0].mxu0
    %v487 = vpop.f32.mrb[0].mxu0
    %v488 = vpop.f32.mrb[0].mxu0
    %489 = vdwg.mxu0
    %490 = vst [vmem:[#allocation10] sm:$0xff] %v485
    // Predicated region
    $region54: #{tpu_custom_call.1} parent=1 // pred_check
      _
    $region55: #{tpu_custom_call.1} parent=1 // pred_check_branch
      %492 = sbr.rel (0) target = $region57
    $region56: #{tpu_custom_call.1} parent=1 // pred_region
      %s494 = ssub.s32 128, 128
      %495 = vsyncadd [#allocation4], %s494
      %s497 = sshll.u32 [#allocation10], 4
      %s498 = int_to_ptr.vmem [resolvable:$true] %s497
      %500 = dma.vmem_to_hbm [thread:$0]  %s498, 128, %s9, [#allocation4]
    $region57: #{tpu_custom_call.1} parent=1 // pred_fallthru
      _
    // Predicated region
    $region58: #{tpu_custom_call.1} parent=1 // pred_check
      _
    $region59: #{tpu_custom_call.1} parent=1 // pred_check_branch
      %502 = sbr.rel (0) target = $region61
    $region60: #{tpu_custom_call.1} parent=1 // pred_region
      %503 = dma.done [#allocation4], 128
    $region61: #{tpu_custom_call.1} parent=1 // pred_fallthru
      _
    %504 = vsyncpa [#allocation3], 1
    %505 = vsyncpa [#allocation6], 1
    %506 = vsyncpa [#allocation9], 1
    %507 = vsyncpa [#allocation4], 1

</llo_original>
